<compile_context>
chip_gen: v7x
topology: tpu7x:2x2x1
jax: 0.10.0
libtpu: 0.0.40
codegen_flags: <defaults>
</compile_context>

<pallas_src>
import functools

import jax
import jax.numpy as jnp
from jax.experimental import pallas as pl
from jax.experimental.pallas import tpu as pltpu


# ----------------------------------------------------------------------------
# helpers
# ----------------------------------------------------------------------------
# ~4 MiB f32 conf block; with an f32 gt block and double buffering this is
# ~16-18 MiB of VMEM, inside the 40 MiB we request on v5e/v6e (128 MiB phys)
# and v7x (64 MiB phys).
_MAX_BLOCK_ELEMS = 1 << 20
_VMEM_LIMIT_BYTES = 40 * 1024 * 1024


def _pow(x, gamma):
  if gamma == 2.0:                 # config always uses focal_gamma = 2
    return x * x
  # generic path is only safe because inputs are clipped to [1e-6, 1-1e-6]
  return jnp.exp(gamma * jnp.log(x))


def _fused_focal(c, pos_bool, gamma):
  """Single-log focal core.

  q = 1-c on positives, c on negatives; fused = q^gamma * log(1-q)  (<= 0).
    loss_pos = -alpha_p * (1-c)^g * log(c)   = -alpha_p * fused  (positives)
    loss_neg = -alpha_n *   c^g   * log(1-c) = -alpha_n * fused  (negatives)
  => one EUP log per element instead of two.
  """
  q = jnp.where(pos_bool, 1.0 - c, c)
  return _pow(q, gamma) * jnp.log(1.0 - q)


def _choose_block_rows(rows, lanes):
  cap = max(32, (_MAX_BLOCK_ELEMS // max(lanes, 1)) // 32 * 32)
  if rows < 32:
    return rows                    # full-dim block (divisibility rule satisfied)
  return min(cap, (rows // 32) * 32)


def _mean_or_zero(s, c):
  return jnp.where(c > 0, s / jnp.maximum(c, 1.0), 0.0)


# ----------------------------------------------------------------------------
# main focal-sum kernel (coarse + fine confidence matrices)
# ----------------------------------------------------------------------------
def _focal_sum_kernel(conf_ref, gt_ref, *rest, gamma, n_rows, block_rows,
                      steps_per_chunk, with_weight, need_row_mask,
                      need_nan_guard):
  """Focal-loss partial sums over one (1, BR, C) tile.

  Persistent (8, C) scratch accumulators (reduced outside):
    acc_lp: sum(pos * m0 * fused)   acc_ln: sum(neg * m0 * fused)
    acc_cp: sum(pos)                acc_cn: sum(neg)     (counts unweighted)
  """
  if with_weight:
    m0_ref, m1_ref, out_ref, acc_lp, acc_ln, acc_cp, acc_cn = rest
  else:
    out_ref, acc_lp, acc_ln, acc_cp, acc_cn = rest

  st = pl.program_id(2)

  @pl.when(st == 0)
  def _init():
    acc_lp[...] = jnp.zeros_like(acc_lp)
    acc_ln[...] = jnp.zeros_like(acc_ln)
    acc_cp[...] = jnp.zeros_like(acc_cp)
    acc_cn[...] = jnp.zeros_like(acc_cn)

  c = jnp.clip(conf_ref[...].astype(jnp.float32), 1e-6, 1.0 - 1e-6)  # (1,BR,C)
  g = gt_ref[...]                                          # native dtype, no cast pass
  pos_b = g == 1.0
  neg_b = g == 0.0

  if need_row_mask:
    # un-clamped global row index (the DMA index_map is clamped; here we mask
    # both the ragged tail of the last block and any duplicated clamped block)
    blk = pl.program_id(1) * steps_per_chunk + st
    rows = jax.lax.broadcasted_iota(jnp.int32, (1, block_rows, 1), 1) \
        + blk * block_rows
    valid = rows < n_rows                                  # (1, BR, 1)
    pos_b = jnp.logical_and(pos_b, valid)
    neg_b = jnp.logical_and(neg_b, valid)
    if need_nan_guard:
      # the partial last block can contain stale VMEM -> keep log() finite
      c = jnp.where(valid, c, 0.5)

  fused = _fused_focal(c, pos_b, gamma)                    # (1, BR, C), <= 0
  pos_f = pos_b.astype(jnp.float32)
  neg_f = neg_b.astype(jnp.float32)

  if with_weight:
    m0 = m0_ref[...]                                       # (1, BR, 1) row weight
    wp = pos_f * m0
    wn = neg_f * m0
  else:
    wp = pos_f
    wn = neg_f

  lanes = acc_lp.shape[-1]

  def _accum(acc, x):
    br = x.shape[1]
    if br % 8 == 0:
      # group-sum across vreg rows: pure VALU adds, no per-step sublane reduce
      acc[...] += x.reshape(br // 8, 8, lanes).sum(axis=0)
    else:                                                  # tiny full-dim block
      acc[...] += jnp.pad(jnp.sum(x, axis=1), ((0, 7), (0, 0)))

  _accum(acc_lp, wp * fused)
  _accum(acc_ln, wn * fused)
  _accum(acc_cp, pos_f)
  _accum(acc_cn, neg_f)

  @pl.when(st == steps_per_chunk - 1)
  def _finalize():
    if with_weight:
      # lane weight m1 factored out of the per-element product, applied once here
      m1 = m1_ref[0]                                       # (1, C)
      out_ref[0, 0:8, :] = acc_lp[...] * m1
      out_ref[0, 8:16, :] = acc_ln[...] * m1
    else:
      out_ref[0, 0:8, :] = acc_lp[...]
      out_ref[0, 8:16, :] = acc_ln[...]
    out_ref[0, 16:24, :] = acc_cp[...]
    out_ref[0, 24:32, :] = acc_cn[...]


def focal_sums(conf, conf_gt, m0=None, m1=None, *, alpha_pos, alpha_neg, gamma):
  """Global focal-loss sums over conf vs. binary conf_gt.

  conf, conf_gt: (B, R, C), streamed in native dtype (no pad/cast passes).
  Optional separable weight m0: (B, R), m1: (B, C) (weight = m0 (x) m1, never
  materialized).  Returns (sum_pos_loss_w, sum_neg_loss_w, count_pos, count_neg)
  with UNWEIGHTED counts (matching torch's .mean() denominator semantics).
  """
  conf = jnp.asarray(conf)
  if not jnp.issubdtype(conf.dtype, jnp.floating):
    conf = conf.astype(jnp.float32)
  gt = jnp.asarray(conf_gt)
  if not jnp.issubdtype(gt.dtype, jnp.floating):
    gt = gt.astype(jnp.float32)

  B, R, C = conf.shape
  BR = _choose_block_rows(R, C)
  nblocks = pl.cdiv(R, BR)
  nchunk = 2 if nblocks >= 2 else 1            # 2nd parallel axis (v7x dual-TC)
  spc = pl.cdiv(nblocks, nchunk)               # inner "arbitrary" steps / chunk
  need_row_mask = (nblocks * BR != R) or (nchunk * spc != nblocks)
  need_nan_guard = (nblocks * BR != R)

  def row_block(b, ch, st):
    return (b, jnp.minimum(ch * spc + st, nblocks - 1), 0)

  inputs = [conf, gt]
  in_specs = [pl.BlockSpec((1, BR, C), row_block),
              pl.BlockSpec((1, BR, C), row_block)]

  with_weight = m0 is not None
  if with_weight:
    m0 = jnp.asarray(m0, jnp.float32)
    m1 = jnp.asarray(m1, jnp.float32)
    rp = nblocks * BR
    if rp != R:
      m0 = jnp.pad(m0, ((0, 0), (0, rp - R)))  # tiny (B, R) pad only
    inputs += [m0[..., None], m1[:, None, :]]
    in_specs += [pl.BlockSpec((1, BR, 1), row_block),
                 pl.BlockSpec((1, 1, C), lambda b, ch, st: (b, 0, 0))]

  kernel = functools.partial(
      _focal_sum_kernel, gamma=float(gamma), n_rows=R, block_rows=BR,
      steps_per_chunk=spc, with_weight=with_weight,
      need_row_mask=need_row_mask, need_nan_guard=need_nan_guard)

  out = pl.pallas_call(
      kernel,
      out_shape=jax.ShapeDtypeStruct((B, nchunk * 32, C), jnp.float32),
      grid=(B, nchunk, spc),
      in_specs=in_specs,
      out_specs=pl.BlockSpec((1, 32, C), lambda b, ch, st: (b, ch, 0)),
      scratch_shapes=[pltpu.VMEM((8, C), jnp.float32) for _ in range(4)],
      compiler_params=pltpu.CompilerParams(
          dimension_semantics=("parallel", "parallel", "arbitrary"),
          vmem_limit_bytes=_VMEM_LIMIT_BYTES),
  )(*inputs)

  part = jnp.sum(out.reshape(B, nchunk, 4, 8, C), axis=(0, 1, 3, 4))  # (4,)
  return ((-float(alpha_pos)) * part[0], (-float(alpha_neg)) * part[1],
          part[2], part[3])


def focal_sums_any(conf, conf_gt, **kw):
  """Fine-path entry: flatten (m, WW, WW) to a lane-dense 2-D problem when
  WW*WW is a multiple of 128 (free contiguous reshape, no padding, no per-window
  grid steps).  Falls back to the 3-D path otherwise."""
  conf = jnp.asarray(conf)
  gt = jnp.asarray(conf_gt)
  total = 1
  for d in conf.shape:
    total *= d
  if total % 128 == 0 and total >= 8 * 128:
    rows = total // 128
    return focal_sums(conf.reshape(1, rows, 128), gt.reshape(1, rows, 128), **kw)
  return focal_sums(conf, gt, **kw)


# ----------------------------------------------------------------------------
# matchability (classification) focal-loss kernel — all 2L maps in one call
# ----------------------------------------------------------------------------
def _matchability_kernel(s_ref, t_ref, m_ref, lp_ref, ln_ref, cp_ref, cn_ref,
                         gp_ref, gu_ref, *, alpha, gamma):
  c = jnp.clip(s_ref[...].astype(jnp.float32), 1e-6, 1.0 - 1e-6)  # (2, L, NHW)
  t = t_ref[...]                                                   # (2, 1, NHW)
  mk = m_ref[...] != 0
  pos_b = jnp.logical_and(t == 1.0, mk)
  neg_b = jnp.logical_and(t == 0.0, mk)
  pos_f = pos_b.astype(jnp.float32)
  neg_f = neg_b.astype(jnp.float32)

  fused = _fused_focal(c, pos_b, gamma)                            # (2, L, NHW)
  gt_half = (c > 0.5).astype(jnp.float32)

  lp_ref[...] = (-alpha) * jnp.sum(pos_f * fused, axis=-1)         # (2, L)
  ln_ref[...] = (-(1.0 - alpha)) * jnp.sum(neg_f * fused, axis=-1)
  cp_ref[...] = jnp.sum(pos_f, axis=-1)                            # (2, 1)
  cn_ref[...] = jnp.sum(neg_f, axis=-1)
  gp_ref[...] = jnp.sum(pos_f * gt_half, axis=-1)                  # (2, L)
  gu_ref[...] = jnp.sum((pos_f + neg_f) * gt_half, axis=-1)


def matchability_stats(scores, targets, masks, *, alpha, gamma):
  """scores: (2, L, NHW); targets/masks: (2, 1, NHW).  Single un-gridded
  pallas_call — whole arrays staged to VMEM once, no per-map launches and no
  redundant target/mask DMAs."""
  _, L, _ = scores.shape
  return pl.pallas_call(
      functools.partial(_matchability_kernel, alpha=float(alpha),
                        gamma=float(gamma)),
      out_shape=(jax.ShapeDtypeStruct((2, L), jnp.float32),
                 jax.ShapeDtypeStruct((2, L), jnp.float32),
                 jax.ShapeDtypeStruct((2, 1), jnp.float32),
                 jax.ShapeDtypeStruct((2, 1), jnp.float32),
                 jax.ShapeDtypeStruct((2, L), jnp.float32),
                 jax.ShapeDtypeStruct((2, L), jnp.float32)),
  )(scores, targets, masks)


def local_l2_loss(expec_f, expec_f_gt, thr):
  # Tiny (M, 2) tensors: plain jnp — a pallas_call here is pure launch overhead.
  f = jnp.asarray(expec_f, jnp.float32)
  gt = jnp.asarray(expec_f_gt, jnp.float32)
  correct = (jnp.max(jnp.abs(gt), axis=1) < thr).astype(jnp.float32)  # (M,)
  d2 = jnp.sum((gt - f) ** 2, axis=1)                                  # (M,)
  cnt = jnp.sum(correct)
  mean_sel = jnp.sum(correct * d2) / jnp.maximum(cnt, 1.0)
  # torch training fallback: if no correct match, force index 0
  # TODO(synk): M == 0 (empty expec_f) is guarded upstream in the torch pipeline.
  return jnp.where(cnt > 0, mean_sel, d2[0])


# ----------------------------------------------------------------------------
# LoFTRLoss forward
# ----------------------------------------------------------------------------
CONFIG = {
    'loftr': {
        'loss': {
            'coarse_type': 'focal',
            'focal_alpha': 0.25,
            'focal_gamma': 2.0,
            'pos_weight': 1.0,
            'neg_weight': 1.0,
            'coarse_weight': 1.0,
            'fine_weight': 0.3,
            'local_weight': 0.25,
            'fine_correct_thr': 1.0,
            'coarse_overlap_weight': False,
            'fine_overlap_weight': False,
        },
        'match_coarse': {'sparse_spvs': False},
        'match_fine': {'sparse_spvs': False, 'local_regress_temperature': 10.0},
        'fine_window_size': 8,
    }
}


def loftr_loss_forward(data, config):
  lcfg = config['loftr']['loss']
  assert lcfg['coarse_type'] == 'focal'
  alpha, gamma = lcfg['focal_alpha'], lcfg['focal_gamma']
  c_pos_w, c_neg_w = lcfg['pos_weight'], lcfg['neg_weight']
  loss_scalars = {}

  # ---- matchability (classification) focal losses: ONE pallas invocation ----
  L = len(data['matchability_score_list0'])
  scores = jnp.stack(
      [jnp.asarray(s).reshape(-1) for s in data['matchability_score_list0']] +
      [jnp.asarray(s).reshape(-1) for s in data['matchability_score_list1']],
      axis=0).astype(jnp.float32).reshape(2, L, -1)                    # (2,L,NHW)
  targets = jnp.stack(
      [jnp.asarray(data['spv_matchability_map0'], jnp.float32).reshape(-1),
       jnp.asarray(data['spv_matchability_map1'], jnp.float32).reshape(-1)],
      axis=0)[:, None, :]                                              # (2,1,NHW)
  if 'mask0' in data:
    masks = jnp.stack(
        [jnp.asarray(data['mask0'], jnp.float32).reshape(-1),
         jnp.asarray(data['mask1'], jnp.float32).reshape(-1)],
        axis=0)[:, None, :]
  else:
    masks = jnp.ones_like(targets)

  lp, ln, cp, cn, gp, gu = matchability_stats(scores, targets, masks,
                                              alpha=0.25, gamma=2.0)
  loss_maps = _mean_or_zero(lp, cp) + _mean_or_zero(ln, cn)            # (2, L)
  # torch: sum((conf[pos|neg] > .5) + 1e-6) == count_gt_half + |union| * 1e-6
  precision = gp / (gu + (cp + cn) * 1e-6)                             # (2, L)
  recall = gp / (cp + 1e-6)
  matchability_loss = jnp.sum(loss_maps) / L
  loss_scalars.update({
      'precision0_2': precision[0, L - 2], 'recall0_2': recall[0, L - 2],
      'precision1_2': precision[1, L - 2], 'recall1_2': recall[1, L - 2],
      'precision0': precision[0, L - 1], 'recall0': recall[0, L - 1],
      'precision1': precision[1, L - 1], 'recall1': recall[1, L - 1],
  })

  # ---- coarse loss (dual_softmax, sparse_spvs=False, no overlap weight) ------
  conf = jnp.asarray(data['conf_matrix'])                              # (N,HW0,HW1)
  if 'mask0' in data:
    Nb = conf.shape[0]
    m0 = jnp.asarray(data['mask0'], jnp.float32).reshape(Nb, -1)       # (N, HW0)
    m1 = jnp.asarray(data['mask1'], jnp.float32).reshape(Nb, -1)       # (N, HW1)
    sp, sn, cpn, cnn = focal_sums(conf, data['conf_matrix_gt'], m0, m1,
                                  alpha_pos=alpha, alpha_neg=alpha, gamma=gamma)
  else:
    sp, sn, cpn, cnn = focal_sums(conf, data['conf_matrix_gt'],
                                  alpha_pos=alpha, alpha_neg=alpha, gamma=gamma)
  # torch's empty pos/neg fallback (weight[0,0,0]=0, c_*_w=0) == the 0-guard here
  loss_c = c_pos_w * _mean_or_zero(sp, cpn) + c_neg_w * _mean_or_zero(sn, cnn)
  loss = loss_c * lcfg['coarse_weight']
  loss_scalars['loss_c'] = loss_c

  # ---- fine loss (fine_sparse_spvs=False, no overlap weight) -----------------
  sp, sn, cpn, cnn = focal_sums_any(
      data['conf_matrix_f'], data['conf_matrix_f_gt'],
      alpha_pos=alpha, alpha_neg=alpha, gamma=gamma)
  loss_f = c_pos_w * _mean_or_zero(sp, cpn) + c_neg_w * _mean_or_zero(sn, cnn)
  loss = loss + loss_f * lcfg['fine_weight']
  loss_scalars['loss_f'] = loss_f

  # ---- local sub-pixel loss ---------------------------------------------------
  if 'expec_f' in data:
    loss_l = local_l2_loss(data['expec_f'], data['expec_f_gt'],
                           lcfg['fine_correct_thr'])
  else:
    # TODO(synk): epipolar branch needs external compute_all_symmetrical_epipolar_errors
    raise NotImplementedError
  loss = loss + loss_l * lcfg['local_weight']
  loss_scalars['loss_l'] = loss_l

  loss = loss + matchability_loss * 0.25
  loss_scalars['loss_cls'] = matchability_loss
  loss_scalars['loss'] = loss
  return loss, loss_scalars


# ----------------------------------------------------------------------------
if __name__ == "__main__":
  def make_data(seed, N, H, W, L, m_fine, M):
    key = jax.random.PRNGKey(seed)
    keys = jax.random.split(key, 20)
    WW = CONFIG['loftr']['fine_window_size'] ** 2           # 64
    return {
        'matchability_score_list0': [
            jax.random.uniform(keys[i], (N, 1, H, W), jnp.float32, 0.01, 0.99)
            for i in range(L)],
        'matchability_score_list1': [
            jax.random.uniform(keys[3 + i], (N, 1, H, W), jnp.float32, 0.01, 0.99)
            for i in range(L)],
        'spv_matchability_map0': jax.random.bernoulli(
            keys[6], 0.3, (N, 1, H, W)).astype(jnp.float32),
        'spv_matchability_map1': jax.random.bernoulli(
            keys[7], 0.3, (N, 1, H, W)).astype(jnp.float32),
        'mask0': jax.random.bernoulli(keys[8], 0.9, (N, H, W)).astype(jnp.float32),
        'mask1': jax.random.bernoulli(keys[9], 0.9, (N, H, W)).astype(jnp.float32),
        'conf_matrix': jax.random.uniform(
            keys[10], (N, H * W, H * W), jnp.float32, 1e-3, 1.0 - 1e-3),
        'conf_matrix_gt': jax.random.bernoulli(
            keys[11], 0.01, (N, H * W, H * W)).astype(jnp.float32),
        'conf_matrix_f': jax.random.uniform(
            keys[12], (m_fine, WW, WW), jnp.float32, 1e-3, 1.0 - 1e-3),
        'conf_matrix_f_gt': jax.random.bernoulli(
            keys[13], 0.05, (m_fine, WW, WW)).astype(jnp.float32),
        'expec_f': 0.5 * jax.random.normal(keys[14], (M, 2), jnp.float32),
        'expec_f_gt': jax.random.uniform(keys[15], (M, 2), jnp.float32, -1.5, 1.5),
    }

  # 1) aligned path: single row block per batch (nblocks == 1)
  data_a = make_data(0, N=2, H=16, W=16, L=3, m_fine=6, M=32)
  loss_a, scalars_a = loftr_loss_forward(data_a, CONFIG)
  loss_a = jax.block_until_ready(loss_a)
  assert bool(jnp.isfinite(loss_a))
  for v in scalars_a.values():
    assert bool(jnp.all(jnp.isfinite(v)))

  # 2) ragged / multi-chunk path: R=C=400 -> BR=384, 2 row blocks, 2 parallel
  #    row chunks, in-kernel tail masking + NaN guard exercised.
  data_b = make_data(0, N=2, H=20, W=20, L=3, m_fine=6, M=32)
  loss_b, scalars_b = loftr_loss_forward(data_b, CONFIG)
  loss_b = jax.block_until_ready(loss_b)
  assert bool(jnp.isfinite(loss_b))
  for v in scalars_b.values():
    assert bool(jnp.all(jnp.isfinite(v)))

  print("KERNEL_OK")
</pallas_src>

<mosaic_0001>
module attributes {stable_mosaic.version = 11 : i64} {
  func.func @_matchability_kernel(%arg0: memref<2x3x512xf32, #tpu.memory_space<vmem>>, %arg1: memref<2x1x512xf32, #tpu.memory_space<vmem>>, %arg2: memref<2x1x512xf32, #tpu.memory_space<vmem>>, %arg3: memref<2x3xf32, #tpu.memory_space<vmem>>, %arg4: memref<2x3xf32, #tpu.memory_space<vmem>>, %arg5: memref<2x1xf32, #tpu.memory_space<vmem>>, %arg6: memref<2x1xf32, #tpu.memory_space<vmem>>, %arg7: memref<2x3xf32, #tpu.memory_space<vmem>>, %arg8: memref<2x3xf32, #tpu.memory_space<vmem>>) attributes {dimension_semantics = [], scalar_prefetch = 0 : i64, scratch_operands = 0 : i64, tpu.core_type = #tpu.core_type<tc>} {
    %c0 = arith.constant 0 : index
    %c0_0 = arith.constant 0 : index
    %c0_1 = arith.constant 0 : index
    %0 = vector.load %arg0[%c0, %c0_0, %c0_1] : memref<2x3x512xf32, #tpu.memory_space<vmem>>, vector<2x3x512xf32>
    %cst = arith.constant 9.99999997E-7 : f32
    %cst_2 = arith.constant 0.999998986 : f32
    %1 = vector.broadcast %cst : f32 to vector<2x3x512xf32>
    %2 = arith.maximumf %1, %0 : vector<2x3x512xf32>
    %3 = vector.broadcast %cst_2 : f32 to vector<2x3x512xf32>
    %4 = arith.minimumf %3, %2 : vector<2x3x512xf32>
    %c0_3 = arith.constant 0 : index
    %c0_4 = arith.constant 0 : index
    %c0_5 = arith.constant 0 : index
    %5 = vector.load %arg1[%c0_3, %c0_4, %c0_5] : memref<2x1x512xf32, #tpu.memory_space<vmem>>, vector<2x1x512xf32>
    %c0_6 = arith.constant 0 : index
    %c0_7 = arith.constant 0 : index
    %c0_8 = arith.constant 0 : index
    %6 = vector.load %arg2[%c0_6, %c0_7, %c0_8] : memref<2x1x512xf32, #tpu.memory_space<vmem>>, vector<2x1x512xf32>
    %cst_9 = arith.constant 0.000000e+00 : f32
    %7 = vector.broadcast %cst_9 : f32 to vector<2x1x512xf32>
    %8 = arith.cmpf one, %6, %7 : vector<2x1x512xf32>
    %cst_10 = arith.constant 1.000000e+00 : f32
    %9 = vector.broadcast %cst_10 : f32 to vector<2x1x512xf32>
    %10 = arith.cmpf oeq, %5, %9 : vector<2x1x512xf32>
    %11 = arith.andi %10, %8 : vector<2x1x512xi1>
    %cst_11 = arith.constant 0.000000e+00 : f32
    %12 = vector.broadcast %cst_11 : f32 to vector<2x1x512xf32>
    %13 = arith.cmpf oeq, %5, %12 : vector<2x1x512xf32>
    %14 = arith.andi %13, %8 : vector<2x1x512xi1>
    %15 = arith.extui %11 : vector<2x1x512xi1> to vector<2x1x512xi32>
    %16 = arith.sitofp %15 : vector<2x1x512xi32> to vector<2x1x512xf32>
    %17 = arith.extui %14 : vector<2x1x512xi1> to vector<2x1x512xi32>
    %18 = arith.sitofp %17 : vector<2x1x512xi32> to vector<2x1x512xf32>
    %cst_12 = arith.constant 1.000000e+00 : f32
    %19 = vector.broadcast %cst_12 : f32 to vector<2x3x512xf32>
    %20 = arith.subf %19, %4 : vector<2x3x512xf32>
    %21 = vector.shape_cast %11 : vector<2x1x512xi1> to vector<2x1x512xi1>
    %22 = vector.broadcast %21 : vector<2x1x512xi1> to vector<2x3x512xi1>
    %23 = arith.select %22, %20, %4 : vector<2x3x512xi1>, vector<2x3x512xf32>
    %24 = arith.mulf %23, %23 : vector<2x3x512xf32>
    %cst_13 = arith.constant 1.000000e+00 : f32
    %25 = vector.broadcast %cst_13 : f32 to vector<2x3x512xf32>
    %26 = arith.subf %25, %23 : vector<2x3x512xf32>
    %27 = math.log %26 : vector<2x3x512xf32>
    %28 = arith.mulf %24, %27 : vector<2x3x512xf32>
    %cst_14 = arith.constant 5.000000e-01 : f32
    %29 = vector.broadcast %cst_14 : f32 to vector<2x3x512xf32>
    %30 = arith.cmpf ogt, %4, %29 : vector<2x3x512xf32>
    %31 = arith.extui %30 : vector<2x3x512xi1> to vector<2x3x512xi32>
    %32 = arith.sitofp %31 : vector<2x3x512xi32> to vector<2x3x512xf32>
    %33 = vector.broadcast %16 : vector<2x1x512xf32> to vector<2x3x512xf32>
    %34 = arith.mulf %33, %28 : vector<2x3x512xf32>
    %cst_15 = arith.constant dense<0.000000e+00> : vector<2x3xf32>
    %35 = vector.multi_reduction <add>, %34, %cst_15 [2] : vector<2x3x512xf32> to vector<2x3xf32>
    %cst_16 = arith.constant -2.500000e-01 : f32
    %36 = vector.broadcast %cst_16 : f32 to vector<2x3xf32>
    %37 = arith.mulf %36, %35 : vector<2x3xf32>
    %c0_17 = arith.constant 0 : index
    %c0_18 = arith.constant 0 : index
    %38 = vector.load %arg3[%c0_17, %c0_18] : memref<2x3xf32, #tpu.memory_space<vmem>>, vector<2x3xf32>
    tpu.vector_store %arg3[%c0_17, %c0_18], %37 {strides = array<i32>} : memref<2x3xf32, #tpu.memory_space<vmem>>, vector<2x3xf32>,
    %39 = vector.broadcast %18 : vector<2x1x512xf32> to vector<2x3x512xf32>
    %40 = arith.mulf %39, %28 : vector<2x3x512xf32>
    %cst_19 = arith.constant dense<0.000000e+00> : vector<2x3xf32>
    %41 = vector.multi_reduction <add>, %40, %cst_19 [2] : vector<2x3x512xf32> to vector<2x3xf32>
    %cst_20 = arith.constant -7.500000e-01 : f32
    %42 = vector.broadcast %cst_20 : f32 to vector<2x3xf32>
    %43 = arith.mulf %42, %41 : vector<2x3xf32>
    %c0_21 = arith.constant 0 : index
    %c0_22 = arith.constant 0 : index
    %44 = vector.load %arg4[%c0_21, %c0_22] : memref<2x3xf32, #tpu.memory_space<vmem>>, vector<2x3xf32>
    tpu.vector_store %arg4[%c0_21, %c0_22], %43 {strides = array<i32>} : memref<2x3xf32, #tpu.memory_space<vmem>>, vector<2x3xf32>,
    %cst_23 = arith.constant dense<0.000000e+00> : vector<2x1xf32>
    %45 = vector.multi_reduction <add>, %16, %cst_23 [2] : vector<2x1x512xf32> to vector<2x1xf32>
    %c0_24 = arith.constant 0 : index
    %c0_25 = arith.constant 0 : index
    %46 = vector.load %arg5[%c0_24, %c0_25] : memref<2x1xf32, #tpu.memory_space<vmem>>, vector<2x1xf32>
    tpu.vector_store %arg5[%c0_24, %c0_25], %45 {strides = array<i32>} : memref<2x1xf32, #tpu.memory_space<vmem>>, vector<2x1xf32>,
    %cst_26 = arith.constant dense<0.000000e+00> : vector<2x1xf32>
    %47 = vector.multi_reduction <add>, %18, %cst_26 [2] : vector<2x1x512xf32> to vector<2x1xf32>
    %c0_27 = arith.constant 0 : index
    %c0_28 = arith.constant 0 : index
    %48 = vector.load %arg6[%c0_27, %c0_28] : memref<2x1xf32, #tpu.memory_space<vmem>>, vector<2x1xf32>
    tpu.vector_store %arg6[%c0_27, %c0_28], %47 {strides = array<i32>} : memref<2x1xf32, #tpu.memory_space<vmem>>, vector<2x1xf32>,
    %49 = vector.broadcast %16 : vector<2x1x512xf32> to vector<2x3x512xf32>
    %50 = arith.mulf %49, %32 : vector<2x3x512xf32>
    %cst_29 = arith.constant dense<0.000000e+00> : vector<2x3xf32>
    %51 = vector.multi_reduction <add>, %50, %cst_29 [2] : vector<2x3x512xf32> to vector<2x3xf32>
    %c0_30 = arith.constant 0 : index
    %c0_31 = arith.constant 0 : index
    %52 = vector.load %arg7[%c0_30, %c0_31] : memref<2x3xf32, #tpu.memory_space<vmem>>, vector<2x3xf32>
    tpu.vector_store %arg7[%c0_30, %c0_31], %51 {strides = array<i32>} : memref<2x3xf32, #tpu.memory_space<vmem>>, vector<2x3xf32>,
    %53 = arith.addf %16, %18 : vector<2x1x512xf32>
    %54 = vector.broadcast %53 : vector<2x1x512xf32> to vector<2x3x512xf32>
    %55 = arith.mulf %54, %32 : vector<2x3x512xf32>
    %cst_32 = arith.constant dense<0.000000e+00> : vector<2x3xf32>
    %56 = vector.multi_reduction <add>, %55, %cst_32 [2] : vector<2x3x512xf32> to vector<2x3xf32>
    %c0_33 = arith.constant 0 : index
    %c0_34 = arith.constant 0 : index
    %57 = vector.load %arg8[%c0_33, %c0_34] : memref<2x3xf32, #tpu.memory_space<vmem>>, vector<2x3xf32>
    tpu.vector_store %arg8[%c0_33, %c0_34], %56 {strides = array<i32>} : memref<2x3xf32, #tpu.memory_space<vmem>>, vector<2x3xf32>,
    return
  }
}

</mosaic_0001>

<llo_original>
// kernel: tpu_custom_call.1
$region0: #{tpu_custom_call.1}
  #allocation0 [shape = 'u32[]', space=smem, size = 0x4, offset = 0x4, fixed_abs, tag = 'smem constant byte address 0x4 - core index']
  #allocation1 [shape = 'u32[144,128]{1,0:T(1,128)}', space=vmem, size = 0x12000, scoped, tag = 'internal scratch']
  %s0 = inlined_call_operand.vmem [shape: f32[2,3,512], index: 0, kind: input, shape index: {}]
  %s1 = inlined_call_operand.vmem [shape: f32[2,1,512], index: 1, kind: input, shape index: {}]
  %s2 = inlined_call_operand.vmem [shape: f32[2,1,512], index: 2, kind: input, shape index: {}]
  %s3 = inlined_call_operand.hbm [shape: f32[2,3], index: 3, kind: output, shape index: {0}]
  %s4 = inlined_call_operand.hbm [shape: f32[2,3], index: 4, kind: output, shape index: {1}]
  %s5 = inlined_call_operand.vmem [shape: f32[2,1], index: 5, kind: output, shape index: {2}]
  %s6 = inlined_call_operand.vmem [shape: f32[2,1], index: 6, kind: output, shape index: {3}]
  %s7 = inlined_call_operand.hbm [shape: f32[2,3], index: 7, kind: output, shape index: {4}]
  %s8 = inlined_call_operand.hbm [shape: f32[2,3], index: 8, kind: output, shape index: {5}]
  %9 = xla_tuple %s3, %s4, %s5, %s6, %s7, %s8
  %s10 = sld [smem:[#allocation0]]
  $region62: #{tpu_custom_call.1} parent=0
    _
  %s12 = ssub.s32 1, %s10
  %s13 = scalar_select 0, %s12, %s10
  $region1: #{tpu_custom_call.1} parent=0
    #allocation2 [shape = 'u8[1024]{0}', space=vmem, size = 0x400, scoped, tag = 'output window, operand 0, single buffered']
    #allocation3 [shape = 's32[1]{0}', space=sflag, size = 0x4, scoped, tag = 'scoped memory for tpu_custom_call.1']
    #allocation4 [shape = 'u8[1024]{0}', space=vmem, size = 0x400, scoped, tag = 'output window, operand 1, single buffered']
    #allocation5 [shape = 's32[1]{0}', space=sflag, size = 0x4, scoped, tag = 'scoped memory for tpu_custom_call.1']
    #allocation6 [shape = 'u8[1024]{0}', space=vmem, size = 0x400, scoped, tag = 'output window, operand 4, single buffered']
    #allocation7 [shape = 'u8[1024]{0}', space=vmem, size = 0x400, scoped, tag = 'output window, operand 5, single buffered']
    #allocation8 [shape = 's32[1]{0}', space=sflag, size = 0x4, scoped, tag = 'scoped memory for tpu_custom_call.1']
    %14 = vsyncpa [#allocation3], 0
    %15 = vsyncpa [#allocation5], 0
    %16 = vsyncpa [#allocation8], 0
    // Predicated region
    $region2: #{tpu_custom_call.1} parent=1 // pred_check
      _
    $region3: #{tpu_custom_call.1} parent=1 // pred_check_branch
      %18 = sbr.rel (0) target = $region5
    $region4: #{tpu_custom_call.1} parent=1 // pred_region
      _
    $region5: #{tpu_custom_call.1} parent=1 // pred_fallthru
      _
    // Predicated region
    $region6: #{tpu_custom_call.1} parent=1 // pred_check
      _
    $region7: #{tpu_custom_call.1} parent=1 // pred_check_branch
      %20 = sbr.rel (0) target = $region9
    $region8: #{tpu_custom_call.1} parent=1 // pred_region
      _
    $region9: #{tpu_custom_call.1} parent=1 // pred_fallthru
      _
    // Predicated region
    $region10: #{tpu_custom_call.1} parent=1 // pred_check
      _
    $region11: #{tpu_custom_call.1} parent=1 // pred_check_branch
      %22 = sbr.rel (0) target = $region13
    $region12: #{tpu_custom_call.1} parent=1 // pred_region
      _
    $region13: #{tpu_custom_call.1} parent=1 // pred_fallthru
      _
    %v23 = vld [vmem:[%s0] sm:$0x77]
    %v24 = vld [vmem:[%s0 + $0x8] sm:$0x77]
    %v25 = vld [vmem:[%s0 + $0x10] sm:$0x77]
    %v26 = vld [vmem:[%s0 + $0x18] sm:$0x77]
    %v27 = vmax.f32 %v23, 1e-06
    %v28 = vmax.f32 %v24, 1e-06
    %v29 = vmax.f32 %v25, 1e-06
    %v30 = vmax.f32 %v26, 1e-06
    %v31 = vmin.f32 %v27, 0.999999
    %v32 = vmin.f32 %v28, 0.999999
    %v33 = vmin.f32 %v29, 0.999999
    %v34 = vmin.f32 %v30, 0.999999
    %v35 = vld [vmem:[%s1] sm:$0xf]
    %v36 = vld [vmem:[%s1 + $0x4] sm:$0xf]
    %v37 = vld [vmem:[%s2] sm:$0xf]
    %v38 = vld [vmem:[%s2 + $0x4] sm:$0xf]
    %vm39 = vcmp.ne.f32.partialorder %v37, 0.0
    %vm40 = vcmp.ne.f32.partialorder %v38, 0.0
    %vm41 = vcmp.eq.f32.partialorder %v35, 1.0
    %vm42 = vcmp.eq.f32.partialorder %v36, 1.0
    %vm43 = vmand %vm41, %vm39
    %vm44 = vmand %vm42, %vm40
    %vm45 = vcmp.eq.f32.partialorder %v35, 0.0
    %vm46 = vcmp.eq.f32.partialorder %v36, 0.0
    %vm47 = vmand %vm45, %vm39
    %vm48 = vmand %vm46, %vm40
    %v49 = vsel %vm43, 1, 0
    %v50 = vsel %vm44, 1, 0
    %v51 = vcvt.s32.f32 %v49
    %v52 = vcvt.s32.f32 %v50
    %v53 = vsel %vm47, 1, 0
    %v54 = vsel %vm48, 1, 0
    %v55 = vcvt.s32.f32 %v53
    %v56 = vcvt.s32.f32 %v54
    %v57 = vsub.f32 1.0, %v31
    %v58 = vsub.f32 1.0, %v32
    %v59 = vsub.f32 1.0, %v33
    %v60 = vsub.f32 1.0, %v34
    %v61 = vlaneseq
    %v62 = vshrl.u32 %v61, 7
    %v63 = vsub.s32 0, %v62
    %v64 = vrot.slane %v49, %v63
    %v65 = vlaneseq
    %v66 = vshrl.u32 %v65, 7
    %v67 = vsub.s32 1, %v66
    %v68 = vrot.slane %v49, %v67
    %v69 = vlaneseq
    %v70 = vshrl.u32 %v69, 7
    %v71 = vsub.s32 2, %v70
    %v72 = vrot.slane %v49, %v71
    %v73 = vlaneseq
    %v74 = vshrl.u32 %v73, 7
    %v75 = vsub.s32 3, %v74
    %v76 = vrot.slane %v49, %v75
    %v77 = vlaneseq
    %v78 = vshrl.u32 %v77, 7
    %v79 = vsub.s32 0, %v78
    %v80 = vrot.slane %v50, %v79
    %v81 = vlaneseq
    %v82 = vshrl.u32 %v81, 7
    %v83 = vsub.s32 1, %v82
    %v84 = vrot.slane %v50, %v83
    %v85 = vlaneseq
    %v86 = vshrl.u32 %v85, 7
    %v87 = vsub.s32 2, %v86
    %v88 = vrot.slane %v50, %v87
    %v89 = vlaneseq
    %v90 = vshrl.u32 %v89, 7
    %v91 = vsub.s32 3, %v90
    %v92 = vrot.slane %v50, %v91
    %vm93 = vcmp.eq.s32.totalorder %v64, 1
    %vm94 = vcmp.eq.s32.totalorder %v68, 1
    %vm95 = vcmp.eq.s32.totalorder %v72, 1
    %vm96 = vcmp.eq.s32.totalorder %v76, 1
    %vm97 = vcmp.eq.s32.totalorder %v80, 1
    %vm98 = vcmp.eq.s32.totalorder %v84, 1
    %vm99 = vcmp.eq.s32.totalorder %v88, 1
    %vm100 = vcmp.eq.s32.totalorder %v92, 1
    %v105 = vcombine.high %v57, %v57
    %v106 = vcombine.high %v58, %v58
    %v107 = vcombine.high %v59, %v59
    %v108 = vcombine.high %v60, %v60
    %v117 = vcombine.high %v31, %v31
    %v118 = vcombine.high %v32, %v32
    %v119 = vcombine.high %v33, %v33
    %v120 = vcombine.high %v34, %v34
    %v125 = vsel %vm93, %v57, %v31
    %v126 = vsel %vm94, %v105, %v117
    %v127 = vsel %vm95, %v58, %v32
    %v128 = vsel %vm96, %v106, %v118
    %v129 = vsel %vm97, %v59, %v33
    %v130 = vsel %vm98, %v107, %v119
    %v131 = vsel %vm99, %v60, %v34
    %v132 = vsel %vm100, %v108, %v120
    %v133 = vmul.f32 %v125, %v125
    %v134 = vmul.f32 %v126, %v126
    %v135 = vmul.f32 %v127, %v127
    %v136 = vmul.f32 %v128, %v128
    %v137 = vmul.f32 %v129, %v129
    %v138 = vmul.f32 %v130, %v130
    %v139 = vmul.f32 %v131, %v131
    %v140 = vmul.f32 %v132, %v132
    %v141 = vsub.f32 1.0, %v125
    %v142 = vsub.f32 1.0, %v126
    %v143 = vsub.f32 1.0, %v127
    %v144 = vsub.f32 1.0, %v128
    %v145 = vsub.f32 1.0, %v129
    %v146 = vsub.f32 1.0, %v130
    %v147 = vsub.f32 1.0, %v131
    %v148 = vsub.f32 1.0, %v132
    %v149 = vlog2.pop %v141
    %v150 = vmul.f32 %v149, 0.6931472
    %v151 = vlog2.pop %v142
    %v152 = vmul.f32 %v151, 0.6931472
    %v153 = vlog2.pop %v143
    %v154 = vmul.f32 %v153, 0.6931472
    %v155 = vlog2.pop %v144
    %v156 = vmul.f32 %v155, 0.6931472
    %v157 = vlog2.pop %v145
    %v158 = vmul.f32 %v157, 0.6931472
    %v159 = vlog2.pop %v146
    %v160 = vmul.f32 %v159, 0.6931472
    %v161 = vlog2.pop %v147
    %v162 = vmul.f32 %v161, 0.6931472
    %v163 = vlog2.pop %v148
    %v164 = vmul.f32 %v163, 0.6931472
    %v165 = vmul.f32 %v133, %v150
    %v166 = vmul.f32 %v134, %v152
    %v167 = vmul.f32 %v135, %v154
    %v168 = vmul.f32 %v136, %v156
    %v169 = vmul.f32 %v137, %v158
    %v170 = vmul.f32 %v138, %v160
    %v171 = vmul.f32 %v139, %v162
    %v172 = vmul.f32 %v140, %v164
    %vm173 = vcmp.gt.f32.partialorder %v31, 0.5
    %vm174 = vcmp.gt.f32.partialorder %v32, 0.5
    %vm175 = vcmp.gt.f32.partialorder %v33, 0.5
    %vm176 = vcmp.gt.f32.partialorder %v34, 0.5
    %v177 = vsel %vm173, 1, 0
    %v178 = vsel %vm174, 1, 0
    %v179 = vsel %vm175, 1, 0
    %v180 = vsel %vm176, 1, 0
    %v181 = vcvt.s32.f32 %v177
    %v182 = vcvt.s32.f32 %v178
    %v183 = vcvt.s32.f32 %v179
    %v184 = vcvt.s32.f32 %v180
    %v187 = vlaneseq
    %v188 = vshrl.u32 %v187, 7
    %v189 = vsub.s32 0, %v188
    %v190 = vrot.slane %v51, %v189
    %v191 = vlaneseq
    %v192 = vshrl.u32 %v191, 7
    %v193 = vsub.s32 1, %v192
    %v194 = vrot.slane %v51, %v193
    %v195 = vlaneseq
    %v196 = vshrl.u32 %v195, 7
    %v197 = vsub.s32 2, %v196
    %v198 = vrot.slane %v51, %v197
    %v199 = vlaneseq
    %v200 = vshrl.u32 %v199, 7
    %v201 = vsub.s32 3, %v200
    %v202 = vrot.slane %v51, %v201
    %v203 = vlaneseq
    %v204 = vshrl.u32 %v203, 7
    %v205 = vsub.s32 0, %v204
    %v206 = vrot.slane %v52, %v205
    %v207 = vlaneseq
    %v208 = vshrl.u32 %v207, 7
    %v209 = vsub.s32 1, %v208
    %v210 = vrot.slane %v52, %v209
    %v211 = vlaneseq
    %v212 = vshrl.u32 %v211, 7
    %v213 = vsub.s32 2, %v212
    %v214 = vrot.slane %v52, %v213
    %v215 = vlaneseq
    %v216 = vshrl.u32 %v215, 7
    %v217 = vsub.s32 3, %v216
    %v218 = vrot.slane %v52, %v217
    %v227 = vmul.f32 %v190, %v165
    %v228 = vmul.f32 %v194, %v166
    %v229 = vmul.f32 %v198, %v167
    %v230 = vmul.f32 %v202, %v168
    %v231 = vmul.f32 %v206, %v169
    %v232 = vmul.f32 %v210, %v170
    %v233 = vmul.f32 %v214, %v171
    %v234 = vmul.f32 %v218, %v172
    %vm235 = vcmask 1042432
    %v236 = vsel %vm235, %v227, 0.0
    %v237 = vsel %vm235, %v228, 0.0
    %v238 = vadd.f32 %v236, %v237
    %v239 = vsel %vm235, %v229, 0.0
    %v240 = vadd.f32 %v238, %v239
    %v241 = vsel %vm235, %v230, 0.0
    %v242 = vadd.f32 %v240, %v241
    %243 = vadd.xlane.f32.xlu0 %v242
    %v244 = vpop.xlane.xlu0 %243
    %v245 = vsel %vm235, %v231, 0.0
    %v246 = vsel %vm235, %v232, 0.0
    %v247 = vadd.f32 %v245, %v246
    %v248 = vsel %vm235, %v233, 0.0
    %v249 = vadd.f32 %v247, %v248
    %v250 = vsel %vm235, %v234, 0.0
    %v251 = vadd.f32 %v249, %v250
    %252 = vadd.xlane.f32.xlu0 %v251
    %v253 = vpop.xlane.xlu0 %252
    %v254 = vmul.f32 %v244, -0.25
    %v255 = vmul.f32 %v253, -0.25
    %v258 = vlaneseq
    %v259 = vand.u32 %v258, 127
    %v260 = vlaneseq
    %v261 = vshrl.u32 %v260, 7
    %v262 = vsub.s32 %v259, %v261
    %v263 = vrot.slane %v254, %v262
    %v264 = vlaneseq
    %v265 = vshrl.u32 %v264, 7
    %v266 = vsub.s32 %v259, %v265
    %v267 = vrot.slane %v255, %v266
    %vm268 = vcmask 1041409
    %v269 = vsel %vm268, %v267, %v263
    %vm271 = vcmask 17408
    %272 = vst.msk [vmem:[#allocation2] sm:$0x3] %vm271, %v269
    %v275 = vlaneseq
    %v276 = vshrl.u32 %v275, 7
    %v277 = vsub.s32 0, %v276
    %v278 = vrot.slane %v55, %v277
    %v279 = vlaneseq
    %v280 = vshrl.u32 %v279, 7
    %v281 = vsub.s32 1, %v280
    %v282 = vrot.slane %v55, %v281
    %v283 = vlaneseq
    %v284 = vshrl.u32 %v283, 7
    %v285 = vsub.s32 2, %v284
    %v286 = vrot.slane %v55, %v285
    %v287 = vlaneseq
    %v288 = vshrl.u32 %v287, 7
    %v289 = vsub.s32 3, %v288
    %v290 = vrot.slane %v55, %v289
    %v291 = vlaneseq
    %v292 = vshrl.u32 %v291, 7
    %v293 = vsub.s32 0, %v292
    %v294 = vrot.slane %v56, %v293
    %v295 = vlaneseq
    %v296 = vshrl.u32 %v295, 7
    %v297 = vsub.s32 1, %v296
    %v298 = vrot.slane %v56, %v297
    %v299 = vlaneseq
    %v300 = vshrl.u32 %v299, 7
    %v301 = vsub.s32 2, %v300
    %v302 = vrot.slane %v56, %v301
    %v303 = vlaneseq
    %v304 = vshrl.u32 %v303, 7
    %v305 = vsub.s32 3, %v304
    %v306 = vrot.slane %v56, %v305
    %v315 = vmul.f32 %v278, %v165
    %v316 = vmul.f32 %v282, %v166
    %v317 = vmul.f32 %v286, %v167
    %v318 = vmul.f32 %v290, %v168
    %v319 = vmul.f32 %v294, %v169
    %v320 = vmul.f32 %v298, %v170
    %v321 = vmul.f32 %v302, %v171
    %v322 = vmul.f32 %v306, %v172
    %v323 = vsel %vm235, %v315, 0.0
    %v324 = vsel %vm235, %v316, 0.0
    %v325 = vadd.f32 %v323, %v324
    %v326 = vsel %vm235, %v317, 0.0
    %v327 = vadd.f32 %v325, %v326
    %v328 = vsel %vm235, %v318, 0.0
    %v329 = vadd.f32 %v327, %v328
    %330 = vadd.xlane.f32.xlu0 %v329
    %v331 = vpop.xlane.xlu0 %330
    %v332 = vsel %vm235, %v319, 0.0
    %v333 = vsel %vm235, %v320, 0.0
    %v334 = vadd.f32 %v332, %v333
    %v335 = vsel %vm235, %v321, 0.0
    %v336 = vadd.f32 %v334, %v335
    %v337 = vsel %vm235, %v322, 0.0
    %v338 = vadd.f32 %v336, %v337
    %339 = vadd.xlane.f32.xlu0 %v338
    %v340 = vpop.xlane.xlu0 %339
    %v341 = vmul.f32 %v331, -0.75
    %v342 = vmul.f32 %v340, -0.75
    %v345 = vlaneseq
    %v346 = vshrl.u32 %v345, 7
    %v347 = vsub.s32 %v259, %v346
    %v348 = vrot.slane %v341, %v347
    %v349 = vlaneseq
    %v350 = vshrl.u32 %v349, 7
    %v351 = vsub.s32 %v259, %v350
    %v352 = vrot.slane %v342, %v351
    %v353 = vsel %vm268, %v352, %v348
    %355 = vst.msk [vmem:[#allocation4] sm:$0x3] %vm271, %v353
    %vm356 = vcmask 1040384
    %v357 = vsel %vm356, %v190, 0.0
    %v358 = vsel %vm356, %v194, 0.0
    %v359 = vadd.f32 %v357, %v358
    %v360 = vsel %vm356, %v198, 0.0
    %v361 = vadd.f32 %v359, %v360
    %v362 = vsel %vm356, %v202, 0.0
    %v363 = vadd.f32 %v361, %v362
    %364 = vadd.xlane.f32.xlu0 %v363
    %v365 = vpop.xlane.xlu0 %364
    %v366 = vsel %vm356, %v206, 0.0
    %v367 = vsel %vm356, %v210, 0.0
    %v368 = vadd.f32 %v366, %v367
    %v369 = vsel %vm356, %v214, 0.0
    %v370 = vadd.f32 %v368, %v369
    %v371 = vsel %vm356, %v218, 0.0
    %v372 = vadd.f32 %v370, %v371
    %373 = vadd.xlane.f32.xlu0 %v372
    %v374 = vpop.xlane.xlu0 %373
    %v377 = vrot.slane %v374, 7
    %v378 = vsel %vm268, %v377, %v365
    %vm380 = vcmask 1024
    %381 = vst.msk [vmem:[%s5] sm:$0x3] %vm380, %v378
    %v382 = vsel %vm356, %v278, 0.0
    %v383 = vsel %vm356, %v282, 0.0
    %v384 = vadd.f32 %v382, %v383
    %v385 = vsel %vm356, %v286, 0.0
    %v386 = vadd.f32 %v384, %v385
    %v387 = vsel %vm356, %v290, 0.0
    %v388 = vadd.f32 %v386, %v387
    %389 = vadd.xlane.f32.xlu0 %v388
    %v390 = vpop.xlane.xlu0 %389
    %v391 = vsel %vm356, %v294, 0.0
    %v392 = vsel %vm356, %v298, 0.0
    %v393 = vadd.f32 %v391, %v392
    %v394 = vsel %vm356, %v302, 0.0
    %v395 = vadd.f32 %v393, %v394
    %v396 = vsel %vm356, %v306, 0.0
    %v397 = vadd.f32 %v395, %v396
    %398 = vadd.xlane.f32.xlu0 %v397
    %v399 = vpop.xlane.xlu0 %398
    %v402 = vrot.slane %v399, 7
    %v403 = vsel %vm268, %v402, %v390
    %405 = vst.msk [vmem:[%s6] sm:$0x3] %vm380, %v403
    %v410 = vcombine.high %v181, %v181
    %v411 = vcombine.high %v182, %v182
    %v412 = vcombine.high %v183, %v183
    %v413 = vcombine.high %v184, %v184
    %v418 = vmul.f32 %v190, %v181
    %v419 = vmul.f32 %v194, %v410
    %v420 = vmul.f32 %v198, %v182
    %v421 = vmul.f32 %v202, %v411
    %v422 = vmul.f32 %v206, %v183
    %v423 = vmul.f32 %v210, %v412
    %v424 = vmul.f32 %v214, %v184
    %v425 = vmul.f32 %v218, %v413
    %v426 = vsel %vm235, %v418, 0.0
    %v427 = vsel %vm235, %v419, 0.0
    %v428 = vadd.f32 %v426, %v427
    %v429 = vsel %vm235, %v420, 0.0
    %v430 = vadd.f32 %v428, %v429
    %v431 = vsel %vm235, %v421, 0.0
    %v432 = vadd.f32 %v430, %v431
    %433 = vadd.xlane.f32.xlu0 %v432
    %v434 = vpop.xlane.xlu0 %433
    %v435 = vsel %vm235, %v422, 0.0
    %v436 = vsel %vm235, %v423, 0.0
    %v437 = vadd.f32 %v435, %v436
    %v438 = vsel %vm235, %v424, 0.0
    %v439 = vadd.f32 %v437, %v438
    %v440 = vsel %vm235, %v425, 0.0
    %v441 = vadd.f32 %v439, %v440
    %442 = vadd.xlane.f32.xlu0 %v441
    %v443 = vpop.xlane.xlu0 %442
    %v446 = vlaneseq
    %v447 = vshrl.u32 %v446, 7
    %v448 = vsub.s32 %v259, %v447
    %v449 = vrot.slane %v434, %v448
    %v450 = vlaneseq
    %v451 = vshrl.u32 %v450, 7
    %v452 = vsub.s32 %v259, %v451
    %v453 = vrot.slane %v443, %v452
    %v454 = vsel %vm268, %v453, %v449
    %456 = vst.msk [vmem:[#allocation6] sm:$0x3] %vm271, %v454
    %v457 = vadd.f32 %v51, %v55
    %v458 = vadd.f32 %v52, %v56
    %v461 = vlaneseq
    %v462 = vshrl.u32 %v461, 7
    %v463 = vsub.s32 0, %v462
    %v464 = vrot.slane %v457, %v463
    %v465 = vlaneseq
    %v466 = vshrl.u32 %v465, 7
    %v467 = vsub.s32 1, %v466
    %v468 = vrot.slane %v457, %v467
    %v469 = vlaneseq
    %v470 = vshrl.u32 %v469, 7
    %v471 = vsub.s32 2, %v470
    %v472 = vrot.slane %v457, %v471
    %v473 = vlaneseq
    %v474 = vshrl.u32 %v473, 7
    %v475 = vsub.s32 3, %v474
    %v476 = vrot.slane %v457, %v475
    %v477 = vlaneseq
    %v478 = vshrl.u32 %v477, 7
    %v479 = vsub.s32 0, %v478
    %v480 = vrot.slane %v458, %v479
    %v481 = vlaneseq
    %v482 = vshrl.u32 %v481, 7
    %v483 = vsub.s32 1, %v482
    %v484 = vrot.slane %v458, %v483
    %v485 = vlaneseq
    %v486 = vshrl.u32 %v485, 7
    %v487 = vsub.s32 2, %v486
    %v488 = vrot.slane %v458, %v487
    %v489 = vlaneseq
    %v490 = vshrl.u32 %v489, 7
    %v491 = vsub.s32 3, %v490
    %v492 = vrot.slane %v458, %v491
    %v501 = vmul.f32 %v464, %v181
    %v502 = vmul.f32 %v468, %v410
    %v503 = vmul.f32 %v472, %v182
    %v504 = vmul.f32 %v476, %v411
    %v505 = vmul.f32 %v480, %v183
    %v506 = vmul.f32 %v484, %v412
    %v507 = vmul.f32 %v488, %v184
    %v508 = vmul.f32 %v492, %v413
    %v509 = vsel %vm235, %v501, 0.0
    %v510 = vsel %vm235, %v502, 0.0
    %v511 = vadd.f32 %v509, %v510
    %v512 = vsel %vm235, %v503, 0.0
    %v513 = vadd.f32 %v511, %v512
    %v514 = vsel %vm235, %v504, 0.0
    %v515 = vadd.f32 %v513, %v514
    %516 = vadd.xlane.f32.xlu0 %v515
    %v517 = vpop.xlane.xlu0 %516
    %v518 = vsel %vm235, %v505, 0.0
    %v519 = vsel %vm235, %v506, 0.0
    %v520 = vadd.f32 %v518, %v519
    %v521 = vsel %vm235, %v507, 0.0
    %v522 = vadd.f32 %v520, %v521
    %v523 = vsel %vm235, %v508, 0.0
    %v524 = vadd.f32 %v522, %v523
    %525 = vadd.xlane.f32.xlu0 %v524
    %v526 = vpop.xlane.xlu0 %525
    %v529 = vlaneseq
    %v530 = vshrl.u32 %v529, 7
    %v531 = vsub.s32 %v259, %v530
    %v532 = vrot.slane %v517, %v531
    %v533 = vlaneseq
    %v534 = vshrl.u32 %v533, 7
    %v535 = vsub.s32 %v259, %v534
    %v536 = vrot.slane %v526, %v535
    %v537 = vsel %vm268, %v536, %v532
    %539 = vst.msk [vmem:[#allocation7] sm:$0x3] %vm271, %v537
    // Predicated region
    $region14: #{tpu_custom_call.1} parent=1 // pred_check
      _
    $region15: #{tpu_custom_call.1} parent=1 // pred_check_branch
      %541 = sbr.rel (0) target = $region17
    $region16: #{tpu_custom_call.1} parent=1 // pred_region
      %s543 = ssub.s32 32, 32
      %544 = vsyncadd [#allocation3], %s543
      %s546 = sshll.u32 [#allocation2], 4
      %s547 = int_to_ptr.vmem [resolvable:$true] %s546
      %549 = dma.vmem_to_hbm [thread:$0]  %s547, 32, %s3, [#allocation3]
    $region17: #{tpu_custom_call.1} parent=1 // pred_fallthru
      _
    // Predicated region
    $region18: #{tpu_custom_call.1} parent=1 // pred_check
      _
    $region19: #{tpu_custom_call.1} parent=1 // pred_check_branch
      %551 = sbr.rel (0) target = $region21
    $region20: #{tpu_custom_call.1} parent=1 // pred_region
      %s553 = ssub.s32 32, 32
      %554 = vsyncadd [#allocation5], %s553
      %s556 = sshll.u32 [#allocation4], 4
      %s557 = int_to_ptr.vmem [resolvable:$true] %s556
      %559 = dma.vmem_to_hbm [thread:$0]  %s557, 32, %s4, [#allocation5]
    $region21: #{tpu_custom_call.1} parent=1 // pred_fallthru
      _
    // Predicated region
    $region22: #{tpu_custom_call.1} parent=1 // pred_check
      _
    $region23: #{tpu_custom_call.1} parent=1 // pred_check_branch
      %561 = sbr.rel (0) target = $region25
    $region24: #{tpu_custom_call.1} parent=1 // pred_region
      _
    $region25: #{tpu_custom_call.1} parent=1 // pred_fallthru
      _
    // Predicated region
    $region26: #{tpu_custom_call.1} parent=1 // pred_check
      _
    $region27: #{tpu_custom_call.1} parent=1 // pred_check_branch
      %563 = sbr.rel (0) target = $region29
    $region28: #{tpu_custom_call.1} parent=1 // pred_region
      _
    $region29: #{tpu_custom_call.1} parent=1 // pred_fallthru
      _
    // Predicated region
    $region30: #{tpu_custom_call.1} parent=1 // pred_check
      _
    $region31: #{tpu_custom_call.1} parent=1 // pred_check_branch
      %565 = sbr.rel (0) target = $region33
    $region32: #{tpu_custom_call.1} parent=1 // pred_region
      %s567 = ssub.s32 32, 32
      %568 = vsyncadd [#allocation5], %s567
      %s570 = sshll.u32 [#allocation6], 4
      %s571 = int_to_ptr.vmem [resolvable:$true] %s570
      %573 = dma.vmem_to_hbm [thread:$0]  %s571, 32, %s7, [#allocation5]
    $region33: #{tpu_custom_call.1} parent=1 // pred_fallthru
      _
    // Predicated region
    $region34: #{tpu_custom_call.1} parent=1 // pred_check
      _
    $region35: #{tpu_custom_call.1} parent=1 // pred_check_branch
      %575 = sbr.rel (0) target = $region37
    $region36: #{tpu_custom_call.1} parent=1 // pred_region
      %s577 = ssub.s32 32, 32
      %578 = vsyncadd [#allocation8], %s577
      %s580 = sshll.u32 [#allocation7], 4
      %s581 = int_to_ptr.vmem [resolvable:$true] %s580
      %583 = dma.vmem_to_hbm [thread:$0]  %s581, 32, %s8, [#allocation8]
    $region37: #{tpu_custom_call.1} parent=1 // pred_fallthru
      _
    // Predicated region
    $region38: #{tpu_custom_call.1} parent=1 // pred_check
      _
    $region39: #{tpu_custom_call.1} parent=1 // pred_check_branch
      %585 = sbr.rel (0) target = $region41
    $region40: #{tpu_custom_call.1} parent=1 // pred_region
      %586 = dma.done [#allocation3], 32
    $region41: #{tpu_custom_call.1} parent=1 // pred_fallthru
      _
    // Predicated region
    $region42: #{tpu_custom_call.1} parent=1 // pred_check
      _
    $region43: #{tpu_custom_call.1} parent=1 // pred_check_branch
      %588 = sbr.rel (0) target = $region45
    $region44: #{tpu_custom_call.1} parent=1 // pred_region
      %589 = dma.done [#allocation5], 32
    $region45: #{tpu_custom_call.1} parent=1 // pred_fallthru
      _
    // Predicated region
    $region46: #{tpu_custom_call.1} parent=1 // pred_check
      _
    $region47: #{tpu_custom_call.1} parent=1 // pred_check_branch
      %591 = sbr.rel (0) target = $region49
    $region48: #{tpu_custom_call.1} parent=1 // pred_region
      _
    $region49: #{tpu_custom_call.1} parent=1 // pred_fallthru
      _
    // Predicated region
    $region50: #{tpu_custom_call.1} parent=1 // pred_check
      _
    $region51: #{tpu_custom_call.1} parent=1 // pred_check_branch
      %593 = sbr.rel (0) target = $region53
    $region52: #{tpu_custom_call.1} parent=1 // pred_region
      _
    $region53: #{tpu_custom_call.1} parent=1 // pred_fallthru
      _
    // Predicated region
    $region54: #{tpu_custom_call.1} parent=1 // pred_check
      _
    $region55: #{tpu_custom_call.1} parent=1 // pred_check_branch
      %595 = sbr.rel (0) target = $region57
    $region56: #{tpu_custom_call.1} parent=1 // pred_region
      %596 = dma.done [#allocation5], 32
    $region57: #{tpu_custom_call.1} parent=1 // pred_fallthru
      _
    // Predicated region
    $region58: #{tpu_custom_call.1} parent=1 // pred_check
      _
    $region59: #{tpu_custom_call.1} parent=1 // pred_check_branch
      %598 = sbr.rel (0) target = $region61
    $region60: #{tpu_custom_call.1} parent=1 // pred_region
      %599 = dma.done [#allocation8], 32
    $region61: #{tpu_custom_call.1} parent=1 // pred_fallthru
      _
    %600 = vsyncpa [#allocation3], 1
    %601 = vsyncpa [#allocation5], 1
    %602 = vsyncpa [#allocation8], 1

</llo_original>
